<compile_context>
chip_gen: v6e
topology: v6e:2x2x1
jax: 0.10.0
libtpu: 0.0.40
codegen_flags: <defaults>
</compile_context>

<pallas_src>
import jax
import jax.numpy as jnp
from jax.experimental import pallas as pl
from jax.experimental.pallas import tpu as pltpu


# ----------------------------------------------------------------------------
# Synthetic mini-BERT encoder (plain-JAX glue; stands in for AutoModel)
# TODO(synk): pretrained HuggingFace BERT replaced by a deterministic synthetic
#             2-layer encoder (no checkpoint load possible in-script).
# TODO(synk): the pooling head could be fused onto the last encoder block's
#             output tiles to remove the remaining HBM round-trip; the encoder
#             here is plain-JAX glue so the head reads its bf16 output instead.
# ----------------------------------------------------------------------------
def _layer_norm(x, g, b, eps=1e-12):
    mu = jnp.mean(x, axis=-1, keepdims=True)
    var = jnp.mean((x - mu) ** 2, axis=-1, keepdims=True)
    return g * (x - mu) / jnp.sqrt(var + eps) + b


def init_lm_params(key, vocab, max_seq, hidden, n_layers, n_heads, inter):
    del n_heads
    std = 0.02
    keys = jax.random.split(key, 2 + n_layers)
    params = {
        "word_emb": jax.random.normal(keys[0], (vocab, hidden), jnp.float32) * std,
        "pos_emb": jax.random.normal(keys[1], (max_seq, hidden), jnp.float32) * std,
        "ln_g": jnp.ones((hidden,), jnp.float32),
        "ln_b": jnp.zeros((hidden,), jnp.float32),
        "layers": [],
    }
    for i in range(n_layers):
        lk = jax.random.split(keys[2 + i], 6)
        params["layers"].append({
            "wq": jax.random.normal(lk[0], (hidden, hidden), jnp.float32) * std,
            "bq": jnp.zeros((hidden,), jnp.float32),
            "wk": jax.random.normal(lk[1], (hidden, hidden), jnp.float32) * std,
            "bk": jnp.zeros((hidden,), jnp.float32),
            "wv": jax.random.normal(lk[2], (hidden, hidden), jnp.float32) * std,
            "bv": jnp.zeros((hidden,), jnp.float32),
            "wo": jax.random.normal(lk[3], (hidden, hidden), jnp.float32) * std,
            "bo": jnp.zeros((hidden,), jnp.float32),
            "w1": jax.random.normal(lk[4], (hidden, inter), jnp.float32) * std,
            "b1": jnp.zeros((inter,), jnp.float32),
            "w2": jax.random.normal(lk[5], (inter, hidden), jnp.float32) * std,
            "b2": jnp.zeros((hidden,), jnp.float32),
            "ln1_g": jnp.ones((hidden,), jnp.float32),
            "ln1_b": jnp.zeros((hidden,), jnp.float32),
            "ln2_g": jnp.ones((hidden,), jnp.float32),
            "ln2_b": jnp.zeros((hidden,), jnp.float32),
        })
    return params


def bert_encoder(params, input_ids, attention_mask, n_heads):
    """Returns last_hidden_state in bf16 (cast fused into the last layernorm)."""
    B, S = input_ids.shape
    H = params["word_emb"].shape[1]
    dh = H // n_heads
    x = params["word_emb"][input_ids] + params["pos_emb"][None, :S, :]
    x = _layer_norm(x, params["ln_g"], params["ln_b"])
    ext = (1.0 - attention_mask.astype(jnp.float32))[:, None, None, :] * -1e9

    def split_heads(t):
        return t.reshape(B, S, n_heads, dh).transpose(0, 2, 1, 3)

    for lp in params["layers"]:
        q = split_heads(x @ lp["wq"] + lp["bq"])
        k = split_heads(x @ lp["wk"] + lp["bk"])
        v = split_heads(x @ lp["wv"] + lp["bv"])
        scores = jnp.einsum("bhqd,bhkd->bhqk", q, k) / jnp.sqrt(jnp.float32(dh)) + ext
        attn = jax.nn.softmax(scores, axis=-1)
        ctx = jnp.einsum("bhqk,bhkd->bhqd", attn, v)
        ctx = ctx.transpose(0, 2, 1, 3).reshape(B, S, H)
        x = _layer_norm(x + (ctx @ lp["wo"] + lp["bo"]), lp["ln1_g"], lp["ln1_b"])
        ff = jax.nn.gelu(x @ lp["w1"] + lp["b1"]) @ lp["w2"] + lp["b2"]
        x = _layer_norm(x + ff, lp["ln2_g"], lp["ln2_b"])
    # Emit bf16 directly so no separate f32->bf16 pass re-reads the tensor.
    return x.astype(jnp.bfloat16)  # last_hidden_state (B, S, H) bf16


# ----------------------------------------------------------------------------
# Pallas kernel: mask fix-up + masked pooling + dropout + Linear classifier
# Operates on one batch tile (TB, S, H) per grid step.  Activations stay bf16
# inside the kernel; only pooled (TB, H) results are promoted to f32.
# ----------------------------------------------------------------------------
_BF16_MIN = float(jnp.finfo(jnp.bfloat16).min)
_BF16_MAX = float(jnp.finfo(jnp.bfloat16).max)


def _make_head_kernel(strategy: str):
    def kernel(emb_ref, am_ref, keep_ref, wt_ref, b_ref,
               logits_ref, drop_ref, doc_ref):
        emb = emb_ref[...]                       # (TB, S, H) bf16, NOT promoted
        am = am_ref[...]                         # (TB, S)    f32
        TB, S, H = emb_ref.shape

        # mask[arange(B), (mask.argmin(1) - 1).clamp(0)] = 0 ; mask[:, 0] = 0
        pos = jax.lax.broadcasted_iota(jnp.int32, (TB, S), 1)
        first_zero = jnp.min(jnp.where(am > 0.0, S, pos), axis=1, keepdims=True)
        argmin_idx = jnp.where(first_zero == S, 0, first_zero)  # torch argmin semantics
        sep_idx = jnp.maximum(argmin_idx - 1, 0)                # (TB, 1)
        m = jnp.where(pos == sep_idx, 0.0, am)
        m = jnp.where(pos == 0, 0.0, m)                         # (TB, S) f32 {0,1}
        mask3 = (m > 0.0)[:, :, None]                           # (TB, S, 1) bool

        def mean_pool():
            # MXU contraction over S: bf16 x bf16 -> f32 accumulate; mask is
            # exactly 0/1 so bf16 is exact.
            m_b16 = m.astype(jnp.bfloat16)[:, None, :]          # (TB, 1, S)
            num = jnp.einsum("bqs,bsh->bqh", m_b16, emb,
                             preferred_element_type=jnp.float32)[:, 0, :]
            den = jnp.sum(m, axis=1, keepdims=True)             # (TB, 1)
            # Clamp only for all-zero (padded) rows so they do not emit NaN;
            # real rows always keep >=1 token after the CLS/SEP fix-up.
            den = jnp.where(den > 0.0, den, 1.0)
            return num * pl.reciprocal(den, approx=False)

        # bf16-representable sentinels instead of global emb.min()/emb.max():
        # identical whenever a row keeps >=1 token (true for every real row
        # after the CLS/SEP fix-up); compare/select stays bf16 (exact).
        def max_pool():
            masked = jnp.where(mask3, emb, jnp.asarray(_BF16_MIN, emb.dtype))
            return jnp.max(masked, axis=1).astype(jnp.float32)

        def min_pool():
            masked = jnp.where(mask3, emb, jnp.asarray(_BF16_MAX, emb.dtype))
            return jnp.min(masked, axis=1).astype(jnp.float32)

        if strategy == "mean_last":
            doc = mean_pool()
        elif strategy == "max_last":
            doc = max_pool()
        elif strategy == "min_last":
            doc = min_pool()
        elif strategy == "max_min_last":
            doc = jnp.concatenate([max_pool(), min_pool()], axis=1)
        elif strategy == "max_mean_last":
            doc = jnp.concatenate([max_pool(), mean_pool()], axis=1)
        else:
            raise ValueError("Unsupported averaging strategy")

        doc_ref[...] = doc
        drop = doc * keep_ref[...]               # F.dropout (mask precomputed, scaled)
        drop_ref[...] = drop
        # wt_ref is (doc_dim, C_pad) bf16 with C zero-padded to a lane-dense
        # 128-multiple; MXU bf16 x bf16 -> f32.
        logits_ref[...] = (
            jnp.dot(drop.astype(jnp.bfloat16), wt_ref[...],
                    preferred_element_type=jnp.float32)
            + b_ref[...]
        )

    return kernel


def _pick_vmem_limit():
    """Explicit scoped-VMEM limit: ~75% of physical, capped at 64 MiB."""
    try:
        info = pltpu.get_tpu_info()
        cap = int(getattr(info, "vmem_capacity_bytes", 128 * 1024 * 1024))
        return int(min(64 * 1024 * 1024, cap * 3 // 4))
    except Exception:
        return 64 * 1024 * 1024


def bert_for_classification_forward(lm_params, clf_w, clf_b, input_ids,
                                     attention_mask, labels, dropout_key,
                                     *, n_heads, strategy="mean_last",
                                     dropout_p=0.1):
    """Returns (logits, labels, drop_doc_emb, doc_emb, clf_weight)."""
    attention_mask_f = attention_mask.astype(jnp.float32)
    # Encoder already emits bf16; this is the tensor the kernel reads.
    emb_bf16 = bert_encoder(lm_params, input_ids, attention_mask_f, n_heads)
    B, S, H = emb_bf16.shape
    C, doc_dim = clf_w.shape

    # Dropout keep-mask with F.dropout semantics (drop prob p, scale 1/(1-p)).
    keep = (jax.random.uniform(dropout_key, (B, doc_dim)) >= dropout_p)
    keep = keep.astype(jnp.float32) / (1.0 - dropout_p)

    # Batch tiling: full (S, H) per block, bf16 in VMEM.
    #   TB=16 at S=512, H=768 bf16 -> 12 MiB/buffer, 24 MiB double-buffered:
    #   fits comfortably under the explicit vmem limit (<=48 MiB on v7x).
    #   Small batches run as a single block (keeps (8,128)-friendly blocks).
    if B <= 8:
        TB = B
    elif B <= 16:
        TB = 8
    else:
        TB = 16
    B_pad = pl.cdiv(B, TB) * TB
    if B_pad != B:
        padn = B_pad - B
        emb_bf16 = jnp.pad(emb_bf16, ((0, padn), (0, 0), (0, 0)))
        am_p = jnp.pad(attention_mask_f, ((0, padn), (0, 0)))
        keep_p = jnp.pad(keep, ((0, padn), (0, 0)))
    else:
        am_p = attention_mask_f
        keep_p = keep

    # Lane-dense classifier output: zero-pad the class dim to a multiple of
    # 128; weight in bf16 (MXU-native, half the resident VMEM), bias in f32.
    C_pad = ((C + 127) // 128) * 128
    wt = jnp.zeros((doc_dim, C_pad), jnp.bfloat16).at[:, :C].set(
        clf_w.T.astype(jnp.bfloat16))
    bt = jnp.zeros((1, C_pad), jnp.float32).at[:, :C].set(clf_b)

    kernel = _make_head_kernel(strategy)
    grid = (B_pad // TB,)

    logits_p, drop_p, doc_p = pl.pallas_call(
        kernel,
        out_shape=(
            jax.ShapeDtypeStruct((B_pad, C_pad), jnp.float32),
            jax.ShapeDtypeStruct((B_pad, doc_dim), jnp.float32),
            jax.ShapeDtypeStruct((B_pad, doc_dim), jnp.float32),
        ),
        grid_spec=pltpu.PrefetchScalarGridSpec(
            num_scalar_prefetch=0,
            grid=grid,
            in_specs=[
                # Batch-tiled activations / masks: double-buffered per step.
                pl.BlockSpec((TB, S, H), lambda b: (b, 0, 0)),
                pl.BlockSpec((TB, S), lambda b: (b, 0)),
                pl.BlockSpec((TB, doc_dim), lambda b: (b, 0)),
                # Small operands with constant block index: VMEM-resident,
                # not re-DMA'd every grid step.
                pl.BlockSpec((doc_dim, C_pad), lambda b: (0, 0)),
                pl.BlockSpec((1, C_pad), lambda b: (0, 0)),
            ],
            out_specs=(
                pl.BlockSpec((TB, C_pad), lambda b: (b, 0)),
                pl.BlockSpec((TB, doc_dim), lambda b: (b, 0)),
                pl.BlockSpec((TB, doc_dim), lambda b: (b, 0)),
            ),
        ),
        compiler_params=pltpu.CompilerParams(
            dimension_semantics=("parallel",),
            vmem_limit_bytes=_pick_vmem_limit(),
        ),
    )(emb_bf16, am_p, keep_p, wt, bt)

    logits = logits_p[:B, :C]
    drop_doc_emb = drop_p[:B]
    doc_emb = doc_p[:B]
    return logits, labels, drop_doc_emb, doc_emb, clf_w


# ----------------------------------------------------------------------------
# Plain-JAX reference for the head (correctness check of the kernel).
# Mirrors the kernel's intentional bf16 rounding of activations and of the
# classifier matmul operands (f32 accumulation in both).
# ----------------------------------------------------------------------------
def _ref_head(emb, am, keep, w, b):
    B, S, H = emb.shape
    pos = jnp.arange(S)[None, :]
    first_zero = jnp.min(jnp.where(am > 0.0, S, pos), axis=1, keepdims=True)
    argmin_idx = jnp.where(first_zero == S, 0, first_zero)
    sep_idx = jnp.maximum(argmin_idx - 1, 0)
    m = jnp.where(pos == sep_idx, 0.0, am)
    m = jnp.where(pos == 0, 0.0, m)
    mask3 = m[:, :, None]
    doc = (emb * mask3).sum(1) / mask3.sum(1)
    drop = doc * keep
    w_b = w.astype(jnp.bfloat16).astype(jnp.float32)
    d_b = drop.astype(jnp.bfloat16).astype(jnp.float32)
    logits = d_b @ w_b.T + b
    return logits, drop, doc


if __name__ == "__main__":
    # Small, BERT-consistent shapes.
    B, S, H, C = 2, 8, 32, 4
    VOCAB, N_LAYERS, N_HEADS, INTER = 100, 2, 2, 64
    STRATEGY = "mean_last"
    DROPOUT_P = 0.1  # BERT hidden_dropout_prob

    root = jax.random.PRNGKey(0)
    k_lm, k_ids, k_lab, k_clf_w, k_clf_b, k_drop = jax.random.split(root, 6)

    lm_params = init_lm_params(k_lm, VOCAB, S, H, N_LAYERS, N_HEADS, INTER)

    doc_dim = H * (2 if STRATEGY in ("max_mean_last", "max_min_last") else 1)
    clf_w = jax.random.normal(k_clf_w, (C, doc_dim), jnp.float32) * 0.05
    clf_b = jax.random.normal(k_clf_b, (C,), jnp.float32) * 0.01

    input_ids = jax.random.randint(k_ids, (B, S), 0, VOCAB, dtype=jnp.int32)
    # Row 0: full sequence; row 1: 5 real tokens then padding.
    attention_mask = jnp.array(
        [[1, 1, 1, 1, 1, 1, 1, 1],
         [1, 1, 1, 1, 1, 0, 0, 0]], dtype=jnp.int32)
    labels = jax.random.randint(k_lab, (B,), 0, C, dtype=jnp.int32)

    outs = bert_for_classification_forward(
        lm_params, clf_w, clf_b, input_ids, attention_mask, labels, k_drop,
        n_heads=N_HEADS, strategy=STRATEGY, dropout_p=DROPOUT_P)
    outs = jax.block_until_ready(outs)
    logits, labels_out, drop_doc_emb, doc_emb, weight_out = outs

    # Reference check of the Pallas head against plain JAX (the kernel reads a
    # bf16 activation tensor, so the reference uses the bf16-rounded values).
    last_states_bf16 = bert_encoder(lm_params, input_ids,
                                    attention_mask.astype(jnp.float32), N_HEADS)
    emb_bf_rounded = last_states_bf16.astype(jnp.float32)
    keep = (jax.random.uniform(k_drop, (B, doc_dim)) >= DROPOUT_P)
    keep = keep.astype(jnp.float32) / (1.0 - DROPOUT_P)
    ref_logits, ref_drop, ref_doc = _ref_head(
        emb_bf_rounded, attention_mask.astype(jnp.float32), keep, clf_w, clf_b)

    assert logits.shape == (B, C) and doc_emb.shape == (B, doc_dim)
    assert jnp.allclose(doc_emb, ref_doc, atol=1e-4, rtol=1e-4)
    assert jnp.allclose(drop_doc_emb, ref_drop, atol=1e-4, rtol=1e-4)
    assert jnp.allclose(logits, ref_logits, atol=1e-4, rtol=1e-4)

    print("KERNEL_OK")
</pallas_src>

<mosaic_0001>
module attributes {stable_mosaic.version = 11 : i64} {
  func.func @kernel(%arg0: i32, %arg1: memref<2x8x32xbf16, #tpu.memory_space<vmem>>, %arg2: memref<2x8xf32, #tpu.memory_space<vmem>>, %arg3: memref<2x32xf32, #tpu.memory_space<vmem>>, %arg4: memref<32x128xbf16, #tpu.memory_space<vmem>>, %arg5: memref<1x128xf32, #tpu.memory_space<vmem>>, %arg6: memref<2x128xf32, #tpu.memory_space<vmem>>, %arg7: memref<2x32xf32, #tpu.memory_space<vmem>>, %arg8: memref<2x32xf32, #tpu.memory_space<vmem>>) attributes {dimension_semantics = [#tpu.dimension_semantics<parallel>], iteration_bounds = array<i64: 1>, scalar_prefetch = 0 : i64, scratch_operands = 0 : i64, tpu.core_type = #tpu.core_type<tc>, window_params = [{transform_indices = @transform_0, window_bounds = array<i64: 2, 8, 32>}, {transform_indices = @transform_1, window_bounds = array<i64: 2, 8>}, {transform_indices = @transform_2, window_bounds = array<i64: 2, 32>}, {pipeline_mode = #tpu.pipeline_mode<synchronous>, transform_indices = @transform_3, window_bounds = array<i64: 32, 128>}, {pipeline_mode = #tpu.pipeline_mode<synchronous>, transform_indices = @transform_4, window_bounds = array<i64: 1, 128>}, {transform_indices = @transform_5, window_bounds = array<i64: 2, 128>}, {transform_indices = @transform_6, window_bounds = array<i64: 2, 32>}, {transform_indices = @transform_7, window_bounds = array<i64: 2, 32>}]} {
    %c0 = arith.constant 0 : index
    %c0_0 = arith.constant 0 : index
    %c0_1 = arith.constant 0 : index
    %0 = vector.load %arg1[%c0, %c0_0, %c0_1] : memref<2x8x32xbf16, #tpu.memory_space<vmem>>, vector<2x8x32xbf16>
    %c0_2 = arith.constant 0 : index
    %c0_3 = arith.constant 0 : index
    %1 = vector.load %arg2[%c0_2, %c0_3] : memref<2x8xf32, #tpu.memory_space<vmem>>, vector<2x8xf32>
    %2 = tpu.iota {dimensions = array<i32: 1>} : vector<2x8xi32>
    %cst = arith.constant 0.000000e+00 : f32
    %3 = vector.broadcast %cst : f32 to vector<2x8xf32>
    %4 = arith.cmpf ogt, %1, %3 : vector<2x8xf32>
    %c8_i32 = arith.constant 8 : i32
    %5 = vector.broadcast %c8_i32 : i32 to vector<2x8xi32>
    %6 = arith.select %4, %5, %2 : vector<2x8xi1>, vector<2x8xi32>
    %cst_4 = arith.constant dense<2147483647> : vector<2xi32>
    %7 = vector.multi_reduction <minsi>, %6, %cst_4 [1] : vector<2x8xi32> to vector<2xi32>
    %8 = vector.shape_cast %7 : vector<2xi32> to vector<2x1xi32>
    %c8_i32_5 = arith.constant 8 : i32
    %9 = vector.broadcast %c8_i32_5 : i32 to vector<2x1xi32>
    %10 = arith.cmpi eq, %8, %9 : vector<2x1xi32>
    %c0_i32 = arith.constant 0 : i32
    %11 = vector.broadcast %c0_i32 : i32 to vector<2x1xi32>
    %12 = arith.select %10, %11, %8 : vector<2x1xi1>, vector<2x1xi32>
    %c1_i32 = arith.constant 1 : i32
    %13 = vector.broadcast %c1_i32 : i32 to vector<2x1xi32>
    %14 = arith.subi %12, %13 : vector<2x1xi32>
    %c0_i32_6 = arith.constant 0 : i32
    %15 = vector.broadcast %c0_i32_6 : i32 to vector<2x1xi32>
    %16 = arith.maxsi %14, %15 : vector<2x1xi32>
    %17 = vector.broadcast %16 : vector<2x1xi32> to vector<2x8xi32>
    %18 = arith.cmpi eq, %2, %17 : vector<2x8xi32>
    %cst_7 = arith.constant 0.000000e+00 : f32
    %19 = vector.broadcast %cst_7 : f32 to vector<2x8xf32>
    %20 = arith.select %18, %19, %1 : vector<2x8xi1>, vector<2x8xf32>
    %c0_i32_8 = arith.constant 0 : i32
    %21 = vector.broadcast %c0_i32_8 : i32 to vector<2x8xi32>
    %22 = arith.cmpi eq, %2, %21 : vector<2x8xi32>
    %cst_9 = arith.constant 0.000000e+00 : f32
    %23 = vector.broadcast %cst_9 : f32 to vector<2x8xf32>
    %24 = arith.select %22, %23, %20 : vector<2x8xi1>, vector<2x8xf32>
    %25 = arith.truncf %24 : vector<2x8xf32> to vector<2x8xbf16>
    %26 = vector.shape_cast %25 : vector<2x8xbf16> to vector<2x1x8xbf16>
    "tpu.trace_start"() <{level = 10 : i32, message = "bqs,bsh->bqh"}> : () -> ()
    %cst_10 = arith.constant dense<0.000000e+00> : vector<2x1x32xf32>
    %27 = tpu.matmul %26, %0, %cst_10 {dimension_numbers = #tpu.dot_dimension_numbers<[2], [1], [1], [2], [0, 0, 0, 1, 1, 2], [0], [0]>} : vector<2x1x8xbf16>, vector<2x8x32xbf16>, vector<2x1x32xf32> -> vector<2x1x32xf32>
    "tpu.trace_stop"() : () -> ()
    %28 = vector.shape_cast %27 : vector<2x1x32xf32> to vector<2x32xf32>
    %cst_11 = arith.constant dense<0.000000e+00> : vector<2xf32>
    %29 = vector.multi_reduction <add>, %24, %cst_11 [1] : vector<2x8xf32> to vector<2xf32>
    %30 = vector.shape_cast %29 : vector<2xf32> to vector<2x1xf32>
    %cst_12 = arith.constant 0.000000e+00 : f32
    %31 = vector.broadcast %cst_12 : f32 to vector<2x1xf32>
    %32 = arith.cmpf ogt, %30, %31 : vector<2x1xf32>
    %cst_13 = arith.constant 1.000000e+00 : f32
    %33 = vector.broadcast %cst_13 : f32 to vector<2x1xf32>
    %34 = arith.select %32, %30, %33 : vector<2x1xi1>, vector<2x1xf32>
    %35 = tpu.reciprocal %34 : vector<2x1xf32> -> vector<2x1xf32>
    %36 = vector.broadcast %35 : vector<2x1xf32> to vector<2x32xf32>
    %37 = arith.mulf %28, %36 : vector<2x32xf32>
    %c0_14 = arith.constant 0 : index
    %c0_15 = arith.constant 0 : index
    %38 = vector.load %arg8[%c0_14, %c0_15] : memref<2x32xf32, #tpu.memory_space<vmem>>, vector<2x32xf32>
    tpu.vector_store %arg8[%c0_14, %c0_15], %37 {strides = array<i32>} : memref<2x32xf32, #tpu.memory_space<vmem>>, vector<2x32xf32>,
    %c0_16 = arith.constant 0 : index
    %c0_17 = arith.constant 0 : index
    %39 = vector.load %arg3[%c0_16, %c0_17] : memref<2x32xf32, #tpu.memory_space<vmem>>, vector<2x32xf32>
    %40 = arith.mulf %37, %39 : vector<2x32xf32>
    %c0_18 = arith.constant 0 : index
    %c0_19 = arith.constant 0 : index
    %41 = vector.load %arg7[%c0_18, %c0_19] : memref<2x32xf32, #tpu.memory_space<vmem>>, vector<2x32xf32>
    tpu.vector_store %arg7[%c0_18, %c0_19], %40 {strides = array<i32>} : memref<2x32xf32, #tpu.memory_space<vmem>>, vector<2x32xf32>,
    %42 = arith.truncf %40 : vector<2x32xf32> to vector<2x32xbf16>
    %c0_20 = arith.constant 0 : index
    %c0_21 = arith.constant 0 : index
    %43 = vector.load %arg4[%c0_20, %c0_21] : memref<32x128xbf16, #tpu.memory_space<vmem>>, vector<32x128xbf16>
    %cst_22 = arith.constant dense<0.000000e+00> : vector<2x128xf32>
    %44 = tpu.matmul %42, %43, %cst_22 {dimension_numbers = #tpu.dot_dimension_numbers<[1], [0], [0], [1], [0, 0, 1, 1], [], []>} : vector<2x32xbf16>, vector<32x128xbf16>, vector<2x128xf32> -> vector<2x128xf32>
    %c0_23 = arith.constant 0 : index
    %c0_24 = arith.constant 0 : index
    %45 = vector.load %arg5[%c0_23, %c0_24] : memref<1x128xf32, #tpu.memory_space<vmem>>, vector<1x128xf32>
    %46 = vector.broadcast %45 : vector<1x128xf32> to vector<2x128xf32>
    %47 = arith.addf %44, %46 : vector<2x128xf32>
    %c0_25 = arith.constant 0 : index
    %c0_26 = arith.constant 0 : index
    %48 = vector.load %arg6[%c0_25, %c0_26] : memref<2x128xf32, #tpu.memory_space<vmem>>, vector<2x128xf32>
    tpu.vector_store %arg6[%c0_25, %c0_26], %47 {strides = array<i32>} : memref<2x128xf32, #tpu.memory_space<vmem>>, vector<2x128xf32>,
    return
  }
  func.func @transform_0(%arg0: i32) -> (i32, i32, i32) {
    %c0_i32 = arith.constant 0 : i32
    %c0_i32_0 = arith.constant 0 : i32
    %c0_i32_1 = arith.constant 0 : i32
    return %arg0, %c0_i32, %c0_i32_0 : i32, i32, i32
  }
  func.func @transform_1(%arg0: i32) -> (i32, i32) {
    %c0_i32 = arith.constant 0 : i32
    %c0_i32_0 = arith.constant 0 : i32
    return %arg0, %c0_i32 : i32, i32
  }
  func.func @transform_2(%arg0: i32) -> (i32, i32) {
    %c0_i32 = arith.constant 0 : i32
    %c0_i32_0 = arith.constant 0 : i32
    return %arg0, %c0_i32 : i32, i32
  }
  func.func @transform_3(%arg0: i32) -> (i32, i32) {
    %c0_i32 = arith.constant 0 : i32
    %c0_i32_0 = arith.constant 0 : i32
    %c0_i32_1 = arith.constant 0 : i32
    return %c0_i32, %c0_i32_0 : i32, i32
  }
  func.func @transform_4(%arg0: i32) -> (i32, i32) {
    %c0_i32 = arith.constant 0 : i32
    %c0_i32_0 = arith.constant 0 : i32
    %c0_i32_1 = arith.constant 0 : i32
    return %c0_i32, %c0_i32_0 : i32, i32
  }
  func.func @transform_5(%arg0: i32) -> (i32, i32) {
    %c0_i32 = arith.constant 0 : i32
    %c0_i32_0 = arith.constant 0 : i32
    return %arg0, %c0_i32 : i32, i32
  }
  func.func @transform_6(%arg0: i32) -> (i32, i32) {
    %c0_i32 = arith.constant 0 : i32
    %c0_i32_0 = arith.constant 0 : i32
    return %arg0, %c0_i32 : i32, i32
  }
  func.func @transform_7(%arg0: i32) -> (i32, i32) {
    %c0_i32 = arith.constant 0 : i32
    %c0_i32_0 = arith.constant 0 : i32
    return %arg0, %c0_i32 : i32, i32
  }
}

</mosaic_0001>

<llo_original>
// kernel: tpu_custom_call.1
$region0: #{tpu_custom_call.1}
  #allocation0 [shape = 'u32[]', space=smem, size = 0x4, offset = 0x4, fixed_abs, tag = 'smem constant byte address 0x4 - core index']
  #allocation1 [shape = 'u32[144,128]{1,0:T(1,128)}', space=vmem, size = 0x12000, scoped, tag = 'internal scratch']
  %s0 = inlined_call_operand.hbm [shape: bf16[2,8,32], index: 0, kind: input, shape index: {}]
  %s1 = inlined_call_operand.hbm [shape: f32[2,8], index: 1, kind: input, shape index: {}]
  %s2 = inlined_call_operand.vmem [shape: f32[2,32], index: 2, kind: input, shape index: {}]
  %s3 = inlined_call_operand.hbm [shape: bf16[32,128], index: 3, kind: input, shape index: {}]
  %s4 = inlined_call_operand.vmem [shape: f32[1,128], index: 4, kind: input, shape index: {}]
  %s5 = inlined_call_operand.hbm [shape: f32[2,128], index: 5, kind: output, shape index: {0}]
  %s6 = inlined_call_operand.hbm [shape: f32[2,32], index: 6, kind: output, shape index: {1}]
  %s7 = inlined_call_operand.hbm [shape: f32[2,32], index: 7, kind: output, shape index: {2}]
  %8 = xla_tuple %s5, %s6, %s7
  %s9 = sld [smem:[#allocation0]]
  $region58: #{tpu_custom_call.1} parent=0
    _
  %s11 = ssub.s32 1, %s9
  %s12 = scalar_select 0, %s11, %s9
  $region1: #{tpu_custom_call.1} parent=0
    #allocation2 [shape = 'u8[4096]{0}', space=vmem, size = 0x1000, scoped, tag = 'input window, operand 0, single buffered']
    #allocation3 [shape = 's32[1]{0}', space=sflag, size = 0x4, scoped, tag = 'scoped memory for tpu_custom_call.1']
    #allocation4 [shape = 's32[1]{0}', space=sflag, size = 0x4, scoped, tag = 'scoped memory for tpu_custom_call.1']
    #allocation5 [shape = 'u8[1024]{0}', space=vmem, size = 0x400, scoped, tag = 'input window, operand 1, single buffered']
    #allocation6 [shape = 's32[1]{0}', space=sflag, size = 0x4, scoped, tag = 'scoped memory for tpu_custom_call.1']
    #allocation7 [shape = 'u8[8192]{0}', space=vmem, size = 0x2000, scoped, tag = 'input window, operand 3, single buffered']
    #allocation8 [shape = 'u8[1024]{0}', space=vmem, size = 0x400, scoped, tag = 'output window, operand 0, single buffered']
    #allocation9 [shape = 'u8[1024]{0}', space=vmem, size = 0x400, scoped, tag = 'output window, operand 1, single buffered']
    #allocation10 [shape = 's32[1]{0}', space=sflag, size = 0x4, scoped, tag = 'scoped memory for tpu_custom_call.1']
    #allocation11 [shape = 'u8[1024]{0}', space=vmem, size = 0x400, scoped, tag = 'output window, operand 2, single buffered']
    %13 = vsyncpa [#allocation3], 0
    %14 = vsyncpa [#allocation6], 0
    %15 = vsyncpa [#allocation4], 0
    %16 = vsyncpa [#allocation10], 0
    // Predicated region
    $region2: #{tpu_custom_call.1} parent=1 // pred_check
      _
    $region3: #{tpu_custom_call.1} parent=1 // pred_check_branch
      %18 = sbr.rel (0) target = $region5
    $region4: #{tpu_custom_call.1} parent=1 // pred_region
      %s20 = ssub.s32 128, 128
      %21 = vsyncadd [#allocation3], %s20
      %s22 = sshll.u32 [#allocation2], 4
      %s23 = int_to_ptr.vmem [resolvable:$true] %s22
      %28 = dma.hbm_to_vmem [thread:$0]  %s0, 128, %s23, [#allocation3], 64, 64, 4
    $region5: #{tpu_custom_call.1} parent=1 // pred_fallthru
      _
    // Predicated region
    $region6: #{tpu_custom_call.1} parent=1 // pred_check
      _
    $region7: #{tpu_custom_call.1} parent=1 // pred_check_branch
      %30 = sbr.rel (0) target = $region9
    $region8: #{tpu_custom_call.1} parent=1 // pred_region
      %s32 = ssub.s32 32, 32
      %33 = vsyncadd [#allocation6], %s32
      %s35 = sshll.u32 [#allocation5], 4
      %s36 = int_to_ptr.vmem [resolvable:$true] %s35
      %38 = dma.hbm_to_vmem [thread:$0]  %s1, 32, %s36, [#allocation6]
    $region9: #{tpu_custom_call.1} parent=1 // pred_fallthru
      _
    // Predicated region
    $region10: #{tpu_custom_call.1} parent=1 // pred_check
      _
    $region11: #{tpu_custom_call.1} parent=1 // pred_check_branch
      %40 = sbr.rel (0) target = $region13
    $region12: #{tpu_custom_call.1} parent=1 // pred_region
      _
    $region13: #{tpu_custom_call.1} parent=1 // pred_fallthru
      _
    // Predicated region
    $region14: #{tpu_custom_call.1} parent=1 // pred_check
      _
    $region15: #{tpu_custom_call.1} parent=1 // pred_check_branch
      %42 = sbr.rel (0) target = $region17
    $region16: #{tpu_custom_call.1} parent=1 // pred_region
      %s44 = ssub.s32 256, 256
      %45 = vsyncadd [#allocation6], %s44
      %s46 = sshll.u32 [#allocation7], 4
      %s47 = int_to_ptr.vmem [resolvable:$true] %s46
      %52 = dma.hbm_to_vmem [thread:$0]  %s3, 256, %s47, [#allocation6], 64, 64, 4
    $region17: #{tpu_custom_call.1} parent=1 // pred_fallthru
      _
    // Predicated region
    $region18: #{tpu_custom_call.1} parent=1 // pred_check
      _
    $region19: #{tpu_custom_call.1} parent=1 // pred_check_branch
      %54 = sbr.rel (0) target = $region21
    $region20: #{tpu_custom_call.1} parent=1 // pred_region
      _
    $region21: #{tpu_custom_call.1} parent=1 // pred_fallthru
      _
    // Predicated region
    $region22: #{tpu_custom_call.1} parent=1 // pred_check
      _
    $region23: #{tpu_custom_call.1} parent=1 // pred_check_branch
      %56 = sbr.rel (0) target = $region25
    $region24: #{tpu_custom_call.1} parent=1 // pred_region
      %57 = dma.done [#allocation3], 128
    $region25: #{tpu_custom_call.1} parent=1 // pred_fallthru
      _
    // Predicated region
    $region26: #{tpu_custom_call.1} parent=1 // pred_check
      _
    $region27: #{tpu_custom_call.1} parent=1 // pred_check_branch
      %59 = sbr.rel (0) target = $region29
    $region28: #{tpu_custom_call.1} parent=1 // pred_region
      %60 = dma.done [#allocation6], 32
    $region29: #{tpu_custom_call.1} parent=1 // pred_fallthru
      _
    // Predicated region
    $region30: #{tpu_custom_call.1} parent=1 // pred_check
      _
    $region31: #{tpu_custom_call.1} parent=1 // pred_check_branch
      %62 = sbr.rel (0) target = $region33
    $region32: #{tpu_custom_call.1} parent=1 // pred_region
      %63 = dma.done [#allocation6], 256
    $region33: #{tpu_custom_call.1} parent=1 // pred_fallthru
      _
    %v65 = vld [vmem:[#allocation2] sm:$0xf]
    %v66 = vld [vmem:[#allocation2 + $0x4] sm:$0xf]
    %v67 = vld [vmem:[#allocation5] sm:$0x3]
    %v68 = vlaneseq
    %v69 = vand.u32 %v68, 127
    %vm70 = vcmp.gt.f32.partialorder %v67, 0.0
    %v71 = vsel %vm70, 8, %v69
    %vm72 = vcmask 58368
    %v73 = vsel %vm72, %v71, 2147483647
    %v74 = vand.u32 %v73, 65535
    %v75 = vshra.s32 %v73, 16
    %v76 = vcvt.s32.f32 %v74
    %v77 = vcvt.s32.f32 %v75
    %78 = vmin.xlane.f32.xlu0 %v77
    %v79 = vpop.xlane.xlu0 %78
    %vm80 = vcmp.eq.f32.partialorder %v77, %v79
    %v81 = vsel %vm80, %v76, inf
    %82 = vmin.xlane.f32.xlu0 %v81
    %v83 = vpop.xlane.xlu0 %82
    %v84 = vcvt.f32.s32 %v83
    %v85 = vcvt.f32.s32 %v79
    %v86 = vshll.u32 %v85, 16
    %v87 = vadd.s32 %v86, %v84
    %vm88 = vcmp.eq.s32.totalorder %v87, 8
    %v89 = vsel %vm88, 0, %v87
    %v90 = vsub.s32 %v89, 1
    %vm91 = vcmp.gt.s32.totalorder %v90, 0
    %v92 = vsel %vm91, %v90, 0
    %vm93 = vcmp.eq.s32.totalorder %v69, %v92
    %v94 = vsel %vm93, 0.0, %v67
    %vm95 = vcmp.eq.s32.totalorder %v69, 0
    %v96 = vsel %vm95, 0.0, %v94
    %v97 = vpack.c.bf16 %v96, %v96
    %v100 = vunpack.c.l.s4 1966171168
    %v101 = vunpack.c.0.s8 %v100
    %v102 = vlaneseq
    %v103 = vshrl.u32 %v102, 7
    %v104 = vsub.s32 %v101, %v103
    %v105 = vrot.slane %v97, %v104
    %v107 = vunpack.c.l.s4 1966171168
    %v108 = vunpack.c.0.s8 %v107
    %v109 = vlaneseq
    %v110 = vshrl.u32 %v109, 7
    %v111 = vsub.s32 %v108, %v110
    %v112 = vrot.slane %v105, %v111
    %v113 = vunpack.i.l.s16 %v112
    %v114 = vunpack.i.h.s16 %v112
    %v115 = vpack.i.b16 %v113, %v113
    %v116 = vlaneseq
    %v117 = vshrl.u32 %v116, 7
    %v118 = vsub.s32 0, %v117
    %v119 = vrot.slane %v115, %v118
    %vm120 = vcmask 64512
    %v122 = vsel %vm120, %v119, 0
    %vm124 = vcmask 1043456
    %v126 = vsel %vm124, %v65, 0
    %128 = vmatprep.subr.bf16.mxu0 0
    %129 = vmatpush1.bf16.msra.mxu0 0
    %130 = vmatprep.subr.bf16.mxu0 0
    %131 = vmatpush1.bf16.msra.mxu0 0
    %132 = vmatprep.subr.bf16.mxu0 0
    %133 = vmatpush1.bf16.msra.mxu0 0
    %134 = vmatprep.subr.bf16.mxu0 0
    %135 = vmatpush1.bf16.msra.mxu0 0
    %136 = vmatprep.subr.bf16.mxu0 0
    %137 = vmatpush1.bf16.msra.mxu0 0
    %138 = vmatprep.subr.bf16.mxu0 0
    %139 = vmatpush1.bf16.msra.mxu0 0
    %140 = vmatprep.subr.bf16.mxu0 0
    %141 = vmatpush1.bf16.msra.mxu0 0
    %142 = vmatprep.subr.bf16.mxu0 0
    %143 = vmatpush1.bf16.msra.mxu0 %v126
    %144 = vmatprep.subr.bf16.mxu0 0
    %145 = vmatpush2.bf16.msra.mxu0 0
    %146 = vmatprep.subr.bf16.mxu0 0
    %147 = vmatpush2.bf16.msra.mxu0 0
    %148 = vmatprep.subr.bf16.mxu0 0
    %149 = vmatpush2.bf16.msra.mxu0 0
    %150 = vmatprep.subr.bf16.mxu0 0
    %151 = vmatpush2.bf16.msra.mxu0 0
    %152 = vmatprep.subr.bf16.mxu0 0
    %153 = vmatpush2.bf16.msra.mxu0 0
    %154 = vmatprep.subr.bf16.mxu0 0
    %155 = vmatpush2.bf16.msra.mxu0 0
    %156 = vmatprep.subr.bf16.mxu0 0
    %157 = vmatpush2.bf16.msra.mxu0 0
    %158 = vmatprep.subr.bf16.mxu0 0
    %159 = vmatpush2.bf16.msra.mxu0 0
    %160 = vmatprep.mubr.bf16.mxu0 0
    %161 = vmatmul.mubr.bf16.gmra.mxu0 %v122
    %v162 = vpop.f32.mrf.mxu0
    %v163 = vadd.f32 0.0, %v162
    %v164 = vpop.f32.mrf.mxu0
    %v165 = vpop.f32.mrf.mxu0
    %v166 = vpop.f32.mrf.mxu0
    %167 = vdwg.mxu0
    %v168 = vpack.i.b16 %v114, %v114
    %v169 = vlaneseq
    %v170 = vshrl.u32 %v169, 7
    %v171 = vsub.s32 0, %v170
    %v172 = vrot.slane %v168, %v171
    %v174 = vsel %vm120, %v172, 0
    %v177 = vsel %vm124, %v66, 0
    %179 = vmatprep.subr.bf16.mxu0 0
    %180 = vmatpush1.bf16.msra.mxu0 0
    %181 = vmatprep.subr.bf16.mxu0 0
    %182 = vmatpush1.bf16.msra.mxu0 0
    %183 = vmatprep.subr.bf16.mxu0 0
    %184 = vmatpush1.bf16.msra.mxu0 0
    %185 = vmatprep.subr.bf16.mxu0 0
    %186 = vmatpush1.bf16.msra.mxu0 0
    %187 = vmatprep.subr.bf16.mxu0 0
    %188 = vmatpush1.bf16.msra.mxu0 0
    %189 = vmatprep.subr.bf16.mxu0 0
    %190 = vmatpush1.bf16.msra.mxu0 0
    %191 = vmatprep.subr.bf16.mxu0 0
    %192 = vmatpush1.bf16.msra.mxu0 0
    %193 = vmatprep.subr.bf16.mxu0 0
    %194 = vmatpush1.bf16.msra.mxu0 %v177
    %195 = vmatprep.subr.bf16.mxu0 0
    %196 = vmatpush2.bf16.msra.mxu0 0
    %197 = vmatprep.subr.bf16.mxu0 0
    %198 = vmatpush2.bf16.msra.mxu0 0
    %199 = vmatprep.subr.bf16.mxu0 0
    %200 = vmatpush2.bf16.msra.mxu0 0
    %201 = vmatprep.subr.bf16.mxu0 0
    %202 = vmatpush2.bf16.msra.mxu0 0
    %203 = vmatprep.subr.bf16.mxu0 0
    %204 = vmatpush2.bf16.msra.mxu0 0
    %205 = vmatprep.subr.bf16.mxu0 0
    %206 = vmatpush2.bf16.msra.mxu0 0
    %207 = vmatprep.subr.bf16.mxu0 0
    %208 = vmatpush2.bf16.msra.mxu0 0
    %209 = vmatprep.subr.bf16.mxu0 0
    %210 = vmatpush2.bf16.msra.mxu0 0
    %211 = vmatprep.mubr.bf16.mxu0 0
    %212 = vmatmul.mubr.bf16.gmra.mxu0 %v174
    %v213 = vpop.f32.mrf.mxu0
    %v214 = vadd.f32 0.0, %v213
    %v215 = vpop.f32.mrf.mxu0
    %v216 = vpop.f32.mrf.mxu0
    %v217 = vpop.f32.mrf.mxu0
    %218 = vdwg.mxu0
    %v219 = vsel %vm72, %v96, 0.0
    %220 = vadd.xlane.f32.xlu0 %v219
    %v221 = vpop.xlane.xlu0 %220
    %vm222 = vcmp.gt.f32.partialorder %v221, 0.0
    %v223 = vsel %vm222, %v221, 1.0
    %v224 = vrcp.pop %v223
    %v226 = vrot.slane %v224, 1
    %v229 = vmul.f32 %v163, %v224
    %v230 = vmul.f32 %v214, %v226
    %v233 = vrot.slane %v230, 7
    %vm234 = vcmask 1041409
    %v235 = vsel %vm234, %v233, %v229
    %vm237 = vcmask 254976
    %238 = vst.msk [vmem:[#allocation11] sm:$0x3] %vm237, %v235
    %v239 = vld [vmem:[%s2] sm:$0x3]
    %v241 = vrot.slane %v239, 1
    %v244 = vmul.f32 %v229, %v239
    %v245 = vmul.f32 %v230, %v241
    %v248 = vrot.slane %v245, 7
    %v249 = vsel %vm234, %v248, %v244
    %251 = vst.msk [vmem:[#allocation9] sm:$0x3] %vm237, %v249
    %v252 = vpack.c.bf16 %v244, %v244
    %v253 = vpack.c.bf16 %v245, %v245
    %v254 = vld [vmem:[#allocation7] sm:$0xf]
    %v255 = vld [vmem:[#allocation7 + $0x4] sm:$0xf]
    %v256 = vld [vmem:[#allocation7 + $0x8] sm:$0xf]
    %v257 = vld [vmem:[#allocation7 + $0xc] sm:$0xf]
    %v258 = vld [vmem:[%s4] sm:$0x1]
    %v260 = vlaneseq
    %v261 = vshrl.u32 %v260, 7
    %v262 = vsub.s32 0, %v261
    %v263 = vrot.slane %v258, %v262
    %v267 = vunpack.c.l.b16 %v252
    %v268 = vunpack.c.l.b16 %v253
    %v269 = vrot.slane %v268, 7
    %v270 = vsel %vm234, %v269, %v267
    %v271 = vpack.c.b16 %v270, %v270
    %v276 = vunpack.c.l.b16 %v254
    %v277 = vunpack.c.l.b16 %v255
    %v278 = vunpack.c.l.b16 %v256
    %v279 = vunpack.c.l.b16 %v257
    %v280 = vpack.c.b16 %v277, %v276
    %v281 = vpack.c.b16 %v279, %v278
    %vm284 = vcmask 261120
    %v286 = vsel %vm284, %v271, 0
    %288 = vmatprep.subr.bf16.mxu0 0
    %289 = vmatpush1.bf16.msra.mxu0 0
    %290 = vmatprep.subr.bf16.mxu0 0
    %291 = vmatpush1.bf16.msra.mxu0 0
    %292 = vmatprep.subr.bf16.mxu0 0
    %293 = vmatpush1.bf16.msra.mxu0 0
    %294 = vmatprep.subr.bf16.mxu0 0
    %295 = vmatpush1.bf16.msra.mxu0 0
    %296 = vmatprep.subr.bf16.mxu0 0
    %297 = vmatpush1.bf16.msra.mxu0 0
    %298 = vmatprep.subr.bf16.mxu0 0
    %299 = vmatpush1.bf16.msra.mxu0 0
    %300 = vmatprep.subr.bf16.mxu0 0
    %301 = vmatpush1.bf16.msra.mxu0 %v281
    %302 = vmatprep.subr.bf16.mxu0 0
    %303 = vmatpush1.bf16.msra.mxu0 %v280
    %304 = vmatprep.subr.bf16.mxu0 0
    %305 = vmatpush2.bf16.msra.mxu0 0
    %306 = vmatprep.subr.bf16.mxu0 0
    %307 = vmatpush2.bf16.msra.mxu0 0
    %308 = vmatprep.subr.bf16.mxu0 0
    %309 = vmatpush2.bf16.msra.mxu0 0
    %310 = vmatprep.subr.bf16.mxu0 0
    %311 = vmatpush2.bf16.msra.mxu0 0
    %312 = vmatprep.subr.bf16.mxu0 0
    %313 = vmatpush2.bf16.msra.mxu0 0
    %314 = vmatprep.subr.bf16.mxu0 0
    %315 = vmatpush2.bf16.msra.mxu0 0
    %316 = vmatprep.subr.bf16.mxu0 0
    %317 = vmatpush2.bf16.msra.mxu0 0
    %318 = vmatprep.subr.bf16.mxu0 0
    %319 = vmatpush2.bf16.msra.mxu0 0
    %320 = vmatprep.mubr.bf16.mxu0 0
    %321 = vmatmul.mubr.bf16.gmra.mxu0 %v286
    %v322 = vpop.f32.mrf.mxu0
    %v323 = vadd.f32 %v263, %v322
    %v324 = vpop.f32.mrf.mxu0
    %v325 = vpop.f32.mrf.mxu0
    %v326 = vpop.f32.mrf.mxu0
    %327 = vdwg.mxu0
    %328 = vst [vmem:[#allocation8] sm:$0x3] %v323
    // Predicated region
    $region34: #{tpu_custom_call.1} parent=1 // pred_check
      _
    $region35: #{tpu_custom_call.1} parent=1 // pred_check_branch
      %330 = sbr.rel (0) target = $region37
    $region36: #{tpu_custom_call.1} parent=1 // pred_region
      %s332 = ssub.s32 32, 32
      %333 = vsyncadd [#allocation4], %s332
      %s335 = sshll.u32 [#allocation8], 4
      %s336 = int_to_ptr.vmem [resolvable:$true] %s335
      %338 = dma.vmem_to_hbm [thread:$0]  %s336, 32, %s5, [#allocation4]
    $region37: #{tpu_custom_call.1} parent=1 // pred_fallthru
      _
    // Predicated region
    $region38: #{tpu_custom_call.1} parent=1 // pred_check
      _
    $region39: #{tpu_custom_call.1} parent=1 // pred_check_branch
      %340 = sbr.rel (0) target = $region41
    $region40: #{tpu_custom_call.1} parent=1 // pred_region
      %s342 = ssub.s32 32, 32
      %343 = vsyncadd [#allocation10], %s342
      %s345 = sshll.u32 [#allocation9], 4
      %s346 = int_to_ptr.vmem [resolvable:$true] %s345
      %348 = dma.vmem_to_hbm [thread:$0]  %s346, 32, %s6, [#allocation10]
    $region41: #{tpu_custom_call.1} parent=1 // pred_fallthru
      _
    // Predicated region
    $region42: #{tpu_custom_call.1} parent=1 // pred_check
      _
    $region43: #{tpu_custom_call.1} parent=1 // pred_check_branch
      %350 = sbr.rel (0) target = $region45
    $region44: #{tpu_custom_call.1} parent=1 // pred_region
      %s352 = ssub.s32 32, 32
      %353 = vsyncadd [#allocation10], %s352
      %s355 = sshll.u32 [#allocation11], 4
      %s356 = int_to_ptr.vmem [resolvable:$true] %s355
      %358 = dma.vmem_to_hbm [thread:$0]  %s356, 32, %s7, [#allocation10]
    $region45: #{tpu_custom_call.1} parent=1 // pred_fallthru
      _
    // Predicated region
    $region46: #{tpu_custom_call.1} parent=1 // pred_check
      _
    $region47: #{tpu_custom_call.1} parent=1 // pred_check_branch
      %360 = sbr.rel (0) target = $region49
    $region48: #{tpu_custom_call.1} parent=1 // pred_region
      %361 = dma.done [#allocation4], 32
    $region49: #{tpu_custom_call.1} parent=1 // pred_fallthru
      _
    // Predicated region
    $region50: #{tpu_custom_call.1} parent=1 // pred_check
      _
    $region51: #{tpu_custom_call.1} parent=1 // pred_check_branch
      %363 = sbr.rel (0) target = $region53
    $region52: #{tpu_custom_call.1} parent=1 // pred_region
      %364 = dma.done [#allocation10], 32
    $region53: #{tpu_custom_call.1} parent=1 // pred_fallthru
      _
    // Predicated region
    $region54: #{tpu_custom_call.1} parent=1 // pred_check
      _
    $region55: #{tpu_custom_call.1} parent=1 // pred_check_branch
      %366 = sbr.rel (0) target = $region57
    $region56: #{tpu_custom_call.1} parent=1 // pred_region
      %367 = dma.done [#allocation10], 32
    $region57: #{tpu_custom_call.1} parent=1 // pred_fallthru
      _
    %368 = vsyncpa [#allocation3], 1
    %369 = vsyncpa [#allocation6], 1
    %370 = vsyncpa [#allocation4], 1
    %371 = vsyncpa [#allocation10], 1

</llo_original>
